<compile_context>
chip_gen: v7x
topology: tpu7x:2x2x1
jax: 0.10.0
libtpu: 0.0.40
codegen_flags: <defaults>
</compile_context>

<pallas_src>
import jax
import jax.numpy as jnp
from jax.experimental import pallas as pl
from jax.experimental.pallas import tpu as pltpu


def _normalize_kernel(x_ref, mean_ref, inv_std_ref, o_ref):
    # x_ref: (TM, TN) tile of the (N*C, H*W) image matrix.
    # mean_ref / inv_std_ref: (TM, 1) per-row (i.e. per-channel) parameters,
    # broadcast across the lane dimension by the VPU.
    o_ref[...] = (x_ref[...] - mean_ref[...]) * inv_std_ref[...]


def _round_up(x, m):
    return ((x + m - 1) // m) * m


def _sublane_align(dtype):
    itemsize = jnp.dtype(dtype).itemsize
    if itemsize >= 4:
        return 8
    if itemsize == 2:
        return 16
    return 32


def _tile_plan(rows, hw, dtype):
    """Per-generation (tm, tn, vmem_limit_bytes) choice."""
    kind = ""
    try:
        kind = jax.devices()[0].device_kind.lower()
    except Exception:
        pass

    if "v7" in kind:
        # ~8 MiB f32 tiles; double-buffered in+out ~32 MiB < 64 MiB physical.
        tm_target, tn_target, vmem_limit = 512, 4096, 48 << 20
        megacore = True
    elif "v6" in kind:
        tm_target, tn_target, vmem_limit = 256, 4096, 40 << 20
        megacore = False
    else:
        # v5e / unknown: 2 MiB tiles stay inside the 16 MiB default scoped VMEM.
        tm_target, tn_target, vmem_limit = 256, 2048, None
        megacore = False

    align = _sublane_align(dtype)

    # Lane tile: full extent when it fits (full-dim blocks are exempt from the
    # 128 rule); otherwise a fixed large multiple of 128 (partial last block).
    tn = hw if hw <= tn_target else tn_target

    # Sublane tile: full (aligned) extent when it fits, else the target.
    tm = min(tm_target, _round_up(rows, align)) if rows <= tm_target else tm_target

    # v7x has 2 TensorCores: ensure a parallel grid axis has >=2 steps so
    # megacore sharding can engage (irrelevant on single-TC v5e/v6e).
    if megacore and pl.cdiv(rows, tm) == 1 and pl.cdiv(hw, tn) == 1:
        if rows >= 2 * align:
            tm = _round_up(pl.cdiv(rows, 2), align)
        elif hw >= 256:
            tn = _round_up(pl.cdiv(hw, 2), 128)

    return tm, tn, vmem_limit


def normalize(img, mean_c, inv_std_c):
    """(img - mean[c]) * inv_std[c] for an NCHW image.

    mean_c / inv_std_c: per-channel (C,) float32 arrays (inv_std precomputed).
    """
    n, c, h, w = img.shape
    dtype = img.dtype
    rows, hw = n * c, h * w

    # View the image as a (N*C, H*W) row matrix: H*W on the lane axis.
    x = img.reshape(rows, hw)

    # Tiny per-row (N*C, 1) parameter tensors, cast to the image dtype
    # (reciprocal was already taken in f32).
    mean_rows = jnp.broadcast_to(
        mean_c.astype(dtype)[None, :, None], (n, c, 1)).reshape(rows, 1)
    inv_std_rows = jnp.broadcast_to(
        inv_std_c.astype(dtype)[None, :, None], (n, c, 1)).reshape(rows, 1)

    tm, tn, vmem_limit = _tile_plan(rows, hw, dtype)
    grid = (pl.cdiv(rows, tm), pl.cdiv(hw, tn))

    out = pl.pallas_call(
        _normalize_kernel,
        grid=grid,
        in_specs=[
            pl.BlockSpec((tm, tn), lambda i, j: (i, j)),
            pl.BlockSpec((tm, 1), lambda i, j: (i, 0)),
            pl.BlockSpec((tm, 1), lambda i, j: (i, 0)),
        ],
        out_specs=pl.BlockSpec((tm, tn), lambda i, j: (i, j)),
        out_shape=jax.ShapeDtypeStruct((rows, hw), dtype),
        compiler_params=pltpu.CompilerParams(
            dimension_semantics=("parallel", "parallel"),
            vmem_limit_bytes=vmem_limit),
    )(x, mean_rows, inv_std_rows)

    return out.reshape(n, c, h, w)


class Normalization:
    """JAX/Pallas equivalent of the PyTorch Normalization module."""

    def __init__(self, mean, std):
        mean_f32 = jnp.asarray(mean, jnp.float32).reshape(-1)
        std_f32 = jnp.asarray(std, jnp.float32).reshape(-1)
        # Hoisted, f32-precision parameter prep: only image-dependent work
        # (reshape/broadcast + the kernel) runs per call.
        self.mean = mean_f32
        self.inv_std = 1.0 / std_f32
        # .view(-1,1,1)-shaped copies kept for parity with the PyTorch module.
        self.mean_view = mean_f32.reshape(-1, 1, 1)
        self.std_view = std_f32.reshape(-1, 1, 1)

    def __call__(self, img):
        return normalize(img, self.mean, self.inv_std)


if __name__ == "__main__":
    key = jax.random.PRNGKey(0)
    # Small NCHW image consistent with the module (per-channel mean/std).
    img = jax.random.uniform(key, (2, 3, 16, 16), dtype=jnp.float32)

    mean = [0.485, 0.456, 0.406]
    std = [0.229, 0.224, 0.225]

    norm = Normalization(mean, std)
    out = jax.block_until_ready(norm(img))

    # Pure-JAX reference (true division).
    ref = (img - jnp.asarray(mean, jnp.float32).reshape(1, 3, 1, 1)) / \
        jnp.asarray(std, jnp.float32).reshape(1, 3, 1, 1)

    assert out.shape == img.shape
    assert jnp.allclose(out, ref, rtol=1e-5, atol=1e-6), float(
        jnp.max(jnp.abs(out - ref)))

    print("KERNEL_OK")
</pallas_src>

<mosaic_0001>
module attributes {stable_mosaic.version = 11 : i64} {
  func.func @_normalize_kernel(%arg0: i32, %arg1: i32, %arg2: memref<8x256xf32, #tpu.memory_space<vmem>>, %arg3: memref<8x1xf32, #tpu.memory_space<vmem>>, %arg4: memref<8x1xf32, #tpu.memory_space<vmem>>, %arg5: memref<8x256xf32, #tpu.memory_space<vmem>>) attributes {dimension_semantics = [#tpu.dimension_semantics<parallel>, #tpu.dimension_semantics<parallel>], iteration_bounds = array<i64: 1, 1>, scalar_prefetch = 0 : i64, scratch_operands = 0 : i64, tpu.core_type = #tpu.core_type<tc>, window_params = [{transform_indices = @transform_0, window_bounds = array<i64: 8, 256>}, {transform_indices = @transform_1, window_bounds = array<i64: 8, 1>}, {transform_indices = @transform_2, window_bounds = array<i64: 8, 1>}, {transform_indices = @transform_3, window_bounds = array<i64: 8, 256>}]} {
    %c0 = arith.constant 0 : index
    %c0_0 = arith.constant 0 : index
    %0 = vector.load %arg2[%c0, %c0_0] : memref<8x256xf32, #tpu.memory_space<vmem>>, vector<8x256xf32>
    %c0_1 = arith.constant 0 : index
    %c0_2 = arith.constant 0 : index
    %1 = vector.load %arg3[%c0_1, %c0_2] : memref<8x1xf32, #tpu.memory_space<vmem>>, vector<8x1xf32>
    %2 = vector.broadcast %1 : vector<8x1xf32> to vector<8x256xf32>
    %3 = arith.subf %0, %2 : vector<8x256xf32>
    %c0_3 = arith.constant 0 : index
    %c0_4 = arith.constant 0 : index
    %4 = vector.load %arg4[%c0_3, %c0_4] : memref<8x1xf32, #tpu.memory_space<vmem>>, vector<8x1xf32>
    %5 = vector.broadcast %4 : vector<8x1xf32> to vector<8x256xf32>
    %6 = arith.mulf %3, %5 : vector<8x256xf32>
    %c0_5 = arith.constant 0 : index
    %c0_6 = arith.constant 0 : index
    %7 = vector.load %arg5[%c0_5, %c0_6] : memref<8x256xf32, #tpu.memory_space<vmem>>, vector<8x256xf32>
    tpu.vector_store %arg5[%c0_5, %c0_6], %6 {strides = array<i32>} : memref<8x256xf32, #tpu.memory_space<vmem>>, vector<8x256xf32>,
    return
  }
  func.func @transform_0(%arg0: i32, %arg1: i32) -> (i32, i32) {
    %c0_i32 = arith.constant 0 : i32
    return %arg0, %arg1 : i32, i32
  }
  func.func @transform_1(%arg0: i32, %arg1: i32) -> (i32, i32) {
    %c0_i32 = arith.constant 0 : i32
    %c0_i32_0 = arith.constant 0 : i32
    return %arg0, %c0_i32 : i32, i32
  }
  func.func @transform_2(%arg0: i32, %arg1: i32) -> (i32, i32) {
    %c0_i32 = arith.constant 0 : i32
    %c0_i32_0 = arith.constant 0 : i32
    return %arg0, %c0_i32 : i32, i32
  }
  func.func @transform_3(%arg0: i32, %arg1: i32) -> (i32, i32) {
    %c0_i32 = arith.constant 0 : i32
    return %arg0, %arg1 : i32, i32
  }
}

</mosaic_0001>

<llo_original>
// kernel: tpu_custom_call.1
$region0: #{tpu_custom_call.1}
  #allocation0 [shape = 'u32[]', space=smem, size = 0x4, offset = 0x4, fixed_abs, tag = 'smem constant byte address 0x4 - core index']
  #allocation1 [shape = 'u32[144,128]{1,0:T(1,128)}', space=vmem, size = 0x12000, scoped, tag = 'internal scratch']
  %s0 = inlined_call_operand.vmem [shape: f32[6,256], index: 0, kind: input, shape index: {}]
  %s1 = inlined_call_operand.vmem [shape: f32[6,1], index: 1, kind: input, shape index: {}]
  %s2 = inlined_call_operand.vmem [shape: f32[6,1], index: 2, kind: input, shape index: {}]
  %s3 = inlined_call_operand.hbm [shape: f32[6,256], index: 3, kind: output, shape index: {}]
  %s4 = sld [smem:[#allocation0]]
  $region22: #{tpu_custom_call.1} parent=0
    _
  %s6 = ssub.s32 1, %s4
  %s7 = scalar_select 0, %s6, %s4
  $region1: #{tpu_custom_call.1} parent=0
    #allocation2 [shape = 'u8[8192]{0}', space=vmem, size = 0x2000, scoped, tag = 'output window, operand 0, single buffered']
    #allocation3 [shape = 's32[1]{0}', space=sflag, size = 0x4, scoped, tag = 'scoped memory for tpu_custom_call.1']
    %8 = vsyncpa [#allocation3], 0
    // Predicated region
    $region2: #{tpu_custom_call.1} parent=1 // pred_check
      _
    $region3: #{tpu_custom_call.1} parent=1 // pred_check_branch
      %10 = sbr.rel (0) target = $region5
    $region4: #{tpu_custom_call.1} parent=1 // pred_region
      _
    $region5: #{tpu_custom_call.1} parent=1 // pred_fallthru
      _
    // Predicated region
    $region6: #{tpu_custom_call.1} parent=1 // pred_check
      _
    $region7: #{tpu_custom_call.1} parent=1 // pred_check_branch
      %12 = sbr.rel (0) target = $region9
    $region8: #{tpu_custom_call.1} parent=1 // pred_region
      _
    $region9: #{tpu_custom_call.1} parent=1 // pred_fallthru
      _
    // Predicated region
    $region10: #{tpu_custom_call.1} parent=1 // pred_check
      _
    $region11: #{tpu_custom_call.1} parent=1 // pred_check_branch
      %14 = sbr.rel (0) target = $region13
    $region12: #{tpu_custom_call.1} parent=1 // pred_region
      _
    $region13: #{tpu_custom_call.1} parent=1 // pred_fallthru
      _
    %v15 = vld [vmem:[%s0] sm:$0xff]
    %v16 = vld [vmem:[%s0 + $0x8] sm:$0xff]
    %v17 = vld [vmem:[%s1] sm:$0xff]
    %19 = vset.pattern.permute.xlu0 0
    %20 = vperm.xlu0 %19, %v17
    %v21 = vpop.permute.xlu0 %20
    %v23 = vsub.f32 %v15, %v21
    %v24 = vsub.f32 %v16, %v21
    %v25 = vld [vmem:[%s2] sm:$0xff]
    %27 = vset.pattern.permute.xlu0 0
    %28 = vperm.xlu0 %27, %v25
    %v29 = vpop.permute.xlu0 %28
    %v31 = vmul.f32 %v23, %v29
    %v32 = vmul.f32 %v24, %v29
    %33 = vst [vmem:[#allocation2] sm:$0xff] %v31
    %34 = vst [vmem:[#allocation2 + $0x8] sm:$0xff] %v32
    // Predicated region
    $region14: #{tpu_custom_call.1} parent=1 // pred_check
      _
    $region15: #{tpu_custom_call.1} parent=1 // pred_check_branch
      %36 = sbr.rel (0) target = $region17
    $region16: #{tpu_custom_call.1} parent=1 // pred_region
      %s38 = ssub.s32 256, 256
      %39 = vsyncadd [#allocation3], %s38
      %s41 = sshll.u32 [#allocation2], 4
      %s42 = int_to_ptr.vmem [resolvable:$true] %s41
      %44 = dma.vmem_to_hbm [thread:$0]  %s42, 256, %s3, [#allocation3]
    $region17: #{tpu_custom_call.1} parent=1 // pred_fallthru
      _
    // Predicated region
    $region18: #{tpu_custom_call.1} parent=1 // pred_check
      _
    $region19: #{tpu_custom_call.1} parent=1 // pred_check_branch
      %46 = sbr.rel (0) target = $region21
    $region20: #{tpu_custom_call.1} parent=1 // pred_region
      %47 = dma.done [#allocation3], 256
    $region21: #{tpu_custom_call.1} parent=1 // pred_fallthru
      _
    %48 = vsyncpa [#allocation3], 1

</llo_original>
